<compile_context>
chip_gen: v7x
topology: tpu7x:2x2x1
jax: 0.10.0
libtpu: 0.0.40
codegen_flags: <defaults>
</compile_context>

<pallas_src>
import jax
import jax.numpy as jnp
from jax.experimental import pallas as pl
from jax.experimental.pallas import tpu as pltpu

_LANE = 128
_SUBLANE = 8


def _round_up(x, m):
    return ((x + m - 1) // m) * m


def _pad2(a, rows, cols):
    r, c = a.shape
    return jnp.pad(a, ((0, rows - r), (0, cols - c)))


def _mlp_kernel_t(x_ref, w1_ref, b1_ref, w2_ref, b2_ref, w3_ref, b3_ref, o_ref):
    """Transposed 3-layer MLP: features on sublanes, batch on lanes."""
    x = x_ref[...]                                                # (in_pad, bm)
    h1 = jnp.tanh(
        jnp.dot(w1_ref[...], x.astype(w1_ref.dtype),
                preferred_element_type=jnp.float32) + b1_ref[...])
    h2 = jnp.tanh(
        jnp.dot(w2_ref[...], h1.astype(w2_ref.dtype),
                preferred_element_type=jnp.float32) + b2_ref[...])
    o_ref[...] = (
        jnp.dot(w3_ref[...], h2.astype(w3_ref.dtype),
                preferred_element_type=jnp.float32) + b3_ref[...]
    ).astype(o_ref.dtype)


def prepare_params(params, *, matmul_dtype=jnp.float32):
    """Pad + transpose the weights ONCE (amortized across every ODE step).

    Weights are stored (in_features, out_features) so x @ W + b matches
    PyTorch's x @ W.T + b.  Here we keep the transposed (out, in) layout the
    kernel consumes directly.  Zero padding provably contributes 0 through the
    tanh layers (tanh(0) = 0 and padded weight rows/cols are zero).
    """
    w1 = jnp.asarray(params["w1"], jnp.float32)      # (in_size, hidden)
    w2 = jnp.asarray(params["w2"], jnp.float32)      # (hidden, hidden)
    w3 = jnp.asarray(params["w3"], jnp.float32)      # (hidden, output_size)
    in_size, hidden = w1.shape
    output_size = w3.shape[1]

    h_pad = _round_up(hidden, _LANE)                 # 100 -> 128
    in_pad = _round_up(in_size, _SUBLANE)            # 2   -> 8
    out_pad = _round_up(output_size, _SUBLANE)       # 1   -> 8

    f32 = jnp.float32
    return {
        "w1_t": _pad2(w1.T, h_pad, in_pad).astype(matmul_dtype),
        "b1": _pad2(jnp.asarray(params["b1"], f32).reshape(hidden, 1), h_pad, 1),
        "w2_t": _pad2(w2.T, h_pad, h_pad).astype(matmul_dtype),
        "b2": _pad2(jnp.asarray(params["b2"], f32).reshape(hidden, 1), h_pad, 1),
        "w3_t": _pad2(w3.T, out_pad, h_pad).astype(matmul_dtype),
        "b3": _pad2(jnp.asarray(params["b3"], f32).reshape(output_size, 1),
                    out_pad, 1),
    }


def _forward_impl(t, y, excitation, pp, *, num_tiles=1):
    B, output_size = y.shape
    excitation_size = excitation.shape[2]
    in_size = output_size + excitation_size

    h_pad, in_pad = pp["w1_t"].shape
    out_pad = pp["w3_t"].shape[0]
    assert in_pad >= in_size and out_pad >= output_size

    b_pad = _round_up(B, _LANE * num_tiles)
    block_m = b_pad // num_tiles

    f32 = jnp.float32
    # Only the needed time slice is read (no full-buffer pad/rewrite).
    exc_t = jax.lax.dynamic_index_in_dim(excitation, t, axis=0, keepdims=False)
    x = jnp.concatenate([y, exc_t], axis=1).astype(f32)           # (B, in_size)
    x_t = jnp.pad(x.T, ((0, in_pad - in_size), (0, b_pad - B)))   # (in_pad, b_pad)

    params_list = [pp["w1_t"], pp["b1"], pp["w2_t"], pp["b2"], pp["w3_t"], pp["b3"]]

    bytes_accessed = int(
        x_t.size * x_t.dtype.itemsize
        + sum(a.size * a.dtype.itemsize for a in params_list)
        + out_pad * b_pad * 4)
    cost = pl.CostEstimate(
        flops=2 * B * (in_size * h_pad + h_pad * h_pad + h_pad * output_size),
        transcendentals=2 * B * h_pad,
        bytes_accessed=bytes_accessed)

    const = lambda i: (0, 0)
    out_t = pl.pallas_call(
        _mlp_kernel_t,
        out_shape=jax.ShapeDtypeStruct((out_pad, b_pad), jnp.float32),
        grid=(num_tiles,),
        in_specs=[
            pl.BlockSpec((in_pad, block_m), lambda i: (0, i)),   # packed input
            pl.BlockSpec((h_pad, in_pad), const),                # W1^T (fused)
            pl.BlockSpec((h_pad, 1), const),                     # b1
            pl.BlockSpec((h_pad, h_pad), const),                 # W2^T
            pl.BlockSpec((h_pad, 1), const),                     # b2
            pl.BlockSpec((out_pad, h_pad), const),               # W3^T
            pl.BlockSpec((out_pad, 1), const),                   # b3
        ],
        out_specs=pl.BlockSpec((out_pad, block_m), lambda i: (0, i)),
        compiler_params=pltpu.CompilerParams(
            dimension_semantics=("parallel",)),
        cost_estimate=cost,
    )(x_t, *params_list)

    return out_t[:output_size, :B].T


derivative_mlp_fe_forward = jax.jit(_forward_impl, static_argnames=("num_tiles",))


def init_params(key, excitation_size=1, output_size=1, hidden_size=100):
    """Deterministic synthetic parameters matching the module's __init__ shapes."""
    in_size = excitation_size + output_size
    k1, k2, k3, k4, k5, k6 = jax.random.split(key, 6)
    scale = 0.1
    return {
        "w1": scale * jax.random.normal(k1, (in_size, hidden_size), jnp.float32),
        "b1": scale * jax.random.normal(k2, (hidden_size,), jnp.float32),
        "w2": scale * jax.random.normal(k3, (hidden_size, hidden_size), jnp.float32),
        "b2": scale * jax.random.normal(k4, (hidden_size,), jnp.float32),
        "w3": scale * jax.random.normal(k5, (hidden_size, output_size), jnp.float32),
        "b3": scale * jax.random.normal(k6, (output_size,), jnp.float32),
    }


def _reference(t, y, excitation, params):
    x = jnp.concatenate([y, excitation[t]], axis=1)
    h1 = jnp.tanh(x @ params["w1"] + params["b1"])
    h2 = jnp.tanh(h1 @ params["w2"] + params["b2"])
    return h2 @ params["w3"] + params["b3"]


if __name__ == "__main__":
    key = jax.random.PRNGKey(0)
    k_p, k_y, k_e = jax.random.split(key, 3)

    excitation_size = 1
    output_size = 1
    hidden_size = 100
    B = 200        # not a multiple of 128 -> exercises batch padding
    T = 6          # length of the excitation buffer (time steps)
    t = 3          # time index used in forward(t, y)

    params = init_params(k_p, excitation_size, output_size, hidden_size)
    padded_params = prepare_params(params)   # once, outside the per-step loop

    y = jax.random.normal(k_y, (B, output_size), jnp.float32)
    excitation = jax.random.normal(k_e, (T, B, excitation_size), jnp.float32)

    ref = _reference(t, y, excitation, params)

    # num_tiles=1: one big tile (v5e/v6e).  num_tiles=2: one tile per v7x TC.
    for num_tiles in (1, 2):
        out = derivative_mlp_fe_forward(t, y, excitation, padded_params,
                                        num_tiles=num_tiles)
        out = jax.block_until_ready(out)
        assert out.shape == (B, output_size)
        assert jnp.allclose(out, ref, atol=1e-5, rtol=1e-5), float(
            jnp.max(jnp.abs(out - ref)))

    print("KERNEL_OK")
</pallas_src>

<mosaic_0001>
module attributes {stable_mosaic.version = 11 : i64} {
  func.func @_mlp_kernel_t(%arg0: i32, %arg1: memref<8x256xf32, #tpu.memory_space<vmem>>, %arg2: memref<128x8xf32, #tpu.memory_space<vmem>>, %arg3: memref<128x1xf32, #tpu.memory_space<vmem>>, %arg4: memref<128x128xf32, #tpu.memory_space<vmem>>, %arg5: memref<128x1xf32, #tpu.memory_space<vmem>>, %arg6: memref<8x128xf32, #tpu.memory_space<vmem>>, %arg7: memref<8x1xf32, #tpu.memory_space<vmem>>, %arg8: memref<8x256xf32, #tpu.memory_space<vmem>>) attributes {dimension_semantics = [#tpu.dimension_semantics<parallel>], iteration_bounds = array<i64: 1>, scalar_prefetch = 0 : i64, scratch_operands = 0 : i64, tpu.core_type = #tpu.core_type<tc>, window_params = [{transform_indices = @transform_0, window_bounds = array<i64: 8, 256>}, {pipeline_mode = #tpu.pipeline_mode<synchronous>, transform_indices = @transform_1, window_bounds = array<i64: 128, 8>}, {pipeline_mode = #tpu.pipeline_mode<synchronous>, transform_indices = @transform_2, window_bounds = array<i64: 128, 1>}, {pipeline_mode = #tpu.pipeline_mode<synchronous>, transform_indices = @transform_3, window_bounds = array<i64: 128, 128>}, {pipeline_mode = #tpu.pipeline_mode<synchronous>, transform_indices = @transform_4, window_bounds = array<i64: 128, 1>}, {pipeline_mode = #tpu.pipeline_mode<synchronous>, transform_indices = @transform_5, window_bounds = array<i64: 8, 128>}, {pipeline_mode = #tpu.pipeline_mode<synchronous>, transform_indices = @transform_6, window_bounds = array<i64: 8, 1>}, {transform_indices = @transform_7, window_bounds = array<i64: 8, 256>}]} {
    %c0 = arith.constant 0 : index
    %c0_0 = arith.constant 0 : index
    %0 = vector.load %arg1[%c0, %c0_0] : memref<8x256xf32, #tpu.memory_space<vmem>>, vector<8x256xf32>
    %c0_1 = arith.constant 0 : index
    %c0_2 = arith.constant 0 : index
    %1 = vector.load %arg2[%c0_1, %c0_2] : memref<128x8xf32, #tpu.memory_space<vmem>>, vector<128x8xf32>
    %cst = arith.constant dense<0.000000e+00> : vector<128x256xf32>
    %2 = tpu.matmul %1, %0, %cst {dimension_numbers = #tpu.dot_dimension_numbers<[1], [0], [0], [1], [0, 0, 1, 1], [], []>} : vector<128x8xf32>, vector<8x256xf32>, vector<128x256xf32> -> vector<128x256xf32>
    %c0_3 = arith.constant 0 : index
    %c0_4 = arith.constant 0 : index
    %3 = vector.load %arg3[%c0_3, %c0_4] : memref<128x1xf32, #tpu.memory_space<vmem>>, vector<128x1xf32>
    %4 = vector.broadcast %3 : vector<128x1xf32> to vector<128x256xf32>
    %5 = arith.addf %2, %4 : vector<128x256xf32>
    %6 = math.tanh %5 : vector<128x256xf32>
    %c0_5 = arith.constant 0 : index
    %c0_6 = arith.constant 0 : index
    %7 = vector.load %arg4[%c0_5, %c0_6] : memref<128x128xf32, #tpu.memory_space<vmem>>, vector<128x128xf32>
    %cst_7 = arith.constant dense<0.000000e+00> : vector<128x256xf32>
    %8 = tpu.matmul %7, %6, %cst_7 {dimension_numbers = #tpu.dot_dimension_numbers<[1], [0], [0], [1], [0, 0, 1, 1], [], []>} : vector<128x128xf32>, vector<128x256xf32>, vector<128x256xf32> -> vector<128x256xf32>
    %c0_8 = arith.constant 0 : index
    %c0_9 = arith.constant 0 : index
    %9 = vector.load %arg5[%c0_8, %c0_9] : memref<128x1xf32, #tpu.memory_space<vmem>>, vector<128x1xf32>
    %10 = vector.broadcast %9 : vector<128x1xf32> to vector<128x256xf32>
    %11 = arith.addf %8, %10 : vector<128x256xf32>
    %12 = math.tanh %11 : vector<128x256xf32>
    %c0_10 = arith.constant 0 : index
    %c0_11 = arith.constant 0 : index
    %13 = vector.load %arg6[%c0_10, %c0_11] : memref<8x128xf32, #tpu.memory_space<vmem>>, vector<8x128xf32>
    %cst_12 = arith.constant dense<0.000000e+00> : vector<8x256xf32>
    %14 = tpu.matmul %13, %12, %cst_12 {dimension_numbers = #tpu.dot_dimension_numbers<[1], [0], [0], [1], [0, 0, 1, 1], [], []>} : vector<8x128xf32>, vector<128x256xf32>, vector<8x256xf32> -> vector<8x256xf32>
    %c0_13 = arith.constant 0 : index
    %c0_14 = arith.constant 0 : index
    %15 = vector.load %arg7[%c0_13, %c0_14] : memref<8x1xf32, #tpu.memory_space<vmem>>, vector<8x1xf32>
    %16 = vector.broadcast %15 : vector<8x1xf32> to vector<8x256xf32>
    %17 = arith.addf %14, %16 : vector<8x256xf32>
    %c0_15 = arith.constant 0 : index
    %c0_16 = arith.constant 0 : index
    %18 = vector.load %arg8[%c0_15, %c0_16] : memref<8x256xf32, #tpu.memory_space<vmem>>, vector<8x256xf32>
    tpu.vector_store %arg8[%c0_15, %c0_16], %17 {strides = array<i32>} : memref<8x256xf32, #tpu.memory_space<vmem>>, vector<8x256xf32>,
    return
  }
  func.func @transform_0(%arg0: i32) -> (i32, i32) {
    %c0_i32 = arith.constant 0 : i32
    %c0_i32_0 = arith.constant 0 : i32
    return %c0_i32, %arg0 : i32, i32
  }
  func.func @transform_1(%arg0: i32) -> (i32, i32) {
    %c0_i32 = arith.constant 0 : i32
    %c0_i32_0 = arith.constant 0 : i32
    %c0_i32_1 = arith.constant 0 : i32
    return %c0_i32, %c0_i32_0 : i32, i32
  }
  func.func @transform_2(%arg0: i32) -> (i32, i32) {
    %c0_i32 = arith.constant 0 : i32
    %c0_i32_0 = arith.constant 0 : i32
    %c0_i32_1 = arith.constant 0 : i32
    return %c0_i32, %c0_i32_0 : i32, i32
  }
  func.func @transform_3(%arg0: i32) -> (i32, i32) {
    %c0_i32 = arith.constant 0 : i32
    %c0_i32_0 = arith.constant 0 : i32
    %c0_i32_1 = arith.constant 0 : i32
    return %c0_i32, %c0_i32_0 : i32, i32
  }
  func.func @transform_4(%arg0: i32) -> (i32, i32) {
    %c0_i32 = arith.constant 0 : i32
    %c0_i32_0 = arith.constant 0 : i32
    %c0_i32_1 = arith.constant 0 : i32
    return %c0_i32, %c0_i32_0 : i32, i32
  }
  func.func @transform_5(%arg0: i32) -> (i32, i32) {
    %c0_i32 = arith.constant 0 : i32
    %c0_i32_0 = arith.constant 0 : i32
    %c0_i32_1 = arith.constant 0 : i32
    return %c0_i32, %c0_i32_0 : i32, i32
  }
  func.func @transform_6(%arg0: i32) -> (i32, i32) {
    %c0_i32 = arith.constant 0 : i32
    %c0_i32_0 = arith.constant 0 : i32
    %c0_i32_1 = arith.constant 0 : i32
    return %c0_i32, %c0_i32_0 : i32, i32
  }
  func.func @transform_7(%arg0: i32) -> (i32, i32) {
    %c0_i32 = arith.constant 0 : i32
    %c0_i32_0 = arith.constant 0 : i32
    return %c0_i32, %arg0 : i32, i32
  }
}

</mosaic_0001>

<llo_original>
// kernel: _forward_impl.1
$region0: #{_forward_impl.1}
  #allocation0 [shape = 'u32[]', space=smem, size = 0x4, offset = 0x4, fixed_abs, tag = 'smem constant byte address 0x4 - core index']
  #allocation1 [shape = 'u32[144,128]{1,0:T(1,128)}', space=vmem, size = 0x12000, scoped, tag = 'internal scratch']
  %s0 = inlined_call_operand.vmem [shape: f32[8,256], index: 0, kind: input, shape index: {}]
  %s1 = inlined_call_operand.vmem [shape: f32[128,8], index: 1, kind: input, shape index: {}]
  %s2 = inlined_call_operand.vmem [shape: f32[128,1], index: 2, kind: input, shape index: {}]
  %s3 = inlined_call_operand.vmem [shape: f32[128,128], index: 3, kind: input, shape index: {}]
  %s4 = inlined_call_operand.vmem [shape: f32[128,1], index: 4, kind: input, shape index: {}]
  %s5 = inlined_call_operand.vmem [shape: f32[8,128], index: 5, kind: input, shape index: {}]
  %s6 = inlined_call_operand.vmem [shape: f32[8,1], index: 6, kind: input, shape index: {}]
  %s7 = inlined_call_operand.vmem [shape: f32[8,256], index: 7, kind: output, shape index: {}]
  %s8 = sld [smem:[#allocation0]]
  $region38: #{_forward_impl.1} parent=0
    _
  %s10 = ssub.s32 1, %s8
  %s11 = scalar_select 0, %s10, %s8
  // Predicated region
  $region2: #{_forward_impl.1} parent=0 // pred_check
    _
  $region3: #{_forward_impl.1} parent=0 // pred_check_branch
    %13 = sbr.rel (0) target = $region5
  $region4: #{_forward_impl.1} parent=0 // pred_region
    _
  $region5: #{_forward_impl.1} parent=0 // pred_fallthru
    _
  // Predicated region
  $region6: #{_forward_impl.1} parent=0 // pred_check
    _
  $region7: #{_forward_impl.1} parent=0 // pred_check_branch
    %15 = sbr.rel (0) target = $region9
  $region8: #{_forward_impl.1} parent=0 // pred_region
    _
  $region9: #{_forward_impl.1} parent=0 // pred_fallthru
    _
  // Predicated region
  $region10: #{_forward_impl.1} parent=0 // pred_check
    _
  $region11: #{_forward_impl.1} parent=0 // pred_check_branch
    %17 = sbr.rel (0) target = $region13
  $region12: #{_forward_impl.1} parent=0 // pred_region
    _
  $region13: #{_forward_impl.1} parent=0 // pred_fallthru
    _
  // Predicated region
  $region14: #{_forward_impl.1} parent=0 // pred_check
    _
  $region15: #{_forward_impl.1} parent=0 // pred_check_branch
    %19 = sbr.rel (0) target = $region17
  $region16: #{_forward_impl.1} parent=0 // pred_region
    _
  $region17: #{_forward_impl.1} parent=0 // pred_fallthru
    _
  // Predicated region
  $region18: #{_forward_impl.1} parent=0 // pred_check
    _
  $region19: #{_forward_impl.1} parent=0 // pred_check_branch
    %21 = sbr.rel (0) target = $region21
  $region20: #{_forward_impl.1} parent=0 // pred_region
    _
  $region21: #{_forward_impl.1} parent=0 // pred_fallthru
    _
  // Predicated region
  $region22: #{_forward_impl.1} parent=0 // pred_check
    _
  $region23: #{_forward_impl.1} parent=0 // pred_check_branch
    %23 = sbr.rel (0) target = $region25
  $region24: #{_forward_impl.1} parent=0 // pred_region
    _
  $region25: #{_forward_impl.1} parent=0 // pred_fallthru
    _
  // Predicated region
  $region26: #{_forward_impl.1} parent=0 // pred_check
    _
  $region27: #{_forward_impl.1} parent=0 // pred_check_branch
    %25 = sbr.rel (0) target = $region29
  $region28: #{_forward_impl.1} parent=0 // pred_region
    _
  $region29: #{_forward_impl.1} parent=0 // pred_fallthru
    _
  %v26 = vld [vmem:[%s0] sm:$0xff]
  %v27 = vld [vmem:[%s0 + $0x8] sm:$0xff]
  %v28 = vld [vmem:[%s1] sm:$0xff]
  %v29 = vld [vmem:[%s1 + $0x8] sm:$0xff]
  %v30 = vld [vmem:[%s1 + $0x10] sm:$0xff]
  %v31 = vld [vmem:[%s1 + $0x18] sm:$0xff]
  %v32 = vld [vmem:[%s1 + $0x20] sm:$0xff]
  %v33 = vld [vmem:[%s1 + $0x28] sm:$0xff]
  %v34 = vld [vmem:[%s1 + $0x30] sm:$0xff]
  %v35 = vld [vmem:[%s1 + $0x38] sm:$0xff]
  %v36 = vld [vmem:[%s1 + $0x40] sm:$0xff]
  %v37 = vld [vmem:[%s1 + $0x48] sm:$0xff]
  %v38 = vld [vmem:[%s1 + $0x50] sm:$0xff]
  %v39 = vld [vmem:[%s1 + $0x58] sm:$0xff]
  %v40 = vld [vmem:[%s1 + $0x60] sm:$0xff]
  %v41 = vld [vmem:[%s1 + $0x68] sm:$0xff]
  %v42 = vld [vmem:[%s1 + $0x70] sm:$0xff]
  %v43 = vld [vmem:[%s1 + $0x78] sm:$0xff]
  %v44 = vld [vmem:[%s2] sm:$0xff]
  %v45 = vld [vmem:[%s2 + $0x8] sm:$0xff]
  %v46 = vld [vmem:[%s2 + $0x10] sm:$0xff]
  %v47 = vld [vmem:[%s2 + $0x18] sm:$0xff]
  %v48 = vld [vmem:[%s2 + $0x20] sm:$0xff]
  %v49 = vld [vmem:[%s2 + $0x28] sm:$0xff]
  %v50 = vld [vmem:[%s2 + $0x30] sm:$0xff]
  %v51 = vld [vmem:[%s2 + $0x38] sm:$0xff]
  %v52 = vld [vmem:[%s2 + $0x40] sm:$0xff]
  %v53 = vld [vmem:[%s2 + $0x48] sm:$0xff]
  %v54 = vld [vmem:[%s2 + $0x50] sm:$0xff]
  %v55 = vld [vmem:[%s2 + $0x58] sm:$0xff]
  %v56 = vld [vmem:[%s2 + $0x60] sm:$0xff]
  %v57 = vld [vmem:[%s2 + $0x68] sm:$0xff]
  %v58 = vld [vmem:[%s2 + $0x70] sm:$0xff]
  %v59 = vld [vmem:[%s2 + $0x78] sm:$0xff]
  %61 = vset.pattern.permute.xlu0 0
  %62 = vperm.xlu0 %61, %v44
  %v63 = vpop.permute.xlu0 %62
  %66 = vset.pattern.permute.xlu0 0
  %67 = vperm.xlu0 %66, %v45
  %v68 = vpop.permute.xlu0 %67
  %71 = vset.pattern.permute.xlu0 0
  %72 = vperm.xlu0 %71, %v46
  %v73 = vpop.permute.xlu0 %72
  %76 = vset.pattern.permute.xlu0 0
  %77 = vperm.xlu0 %76, %v47
  %v78 = vpop.permute.xlu0 %77
  %81 = vset.pattern.permute.xlu0 0
  %82 = vperm.xlu0 %81, %v48
  %v83 = vpop.permute.xlu0 %82
  %86 = vset.pattern.permute.xlu0 0
  %87 = vperm.xlu0 %86, %v49
  %v88 = vpop.permute.xlu0 %87
  %91 = vset.pattern.permute.xlu0 0
  %92 = vperm.xlu0 %91, %v50
  %v93 = vpop.permute.xlu0 %92
  %96 = vset.pattern.permute.xlu0 0
  %97 = vperm.xlu0 %96, %v51
  %v98 = vpop.permute.xlu0 %97
  %101 = vset.pattern.permute.xlu0 0
  %102 = vperm.xlu0 %101, %v52
  %v103 = vpop.permute.xlu0 %102
  %106 = vset.pattern.permute.xlu0 0
  %107 = vperm.xlu0 %106, %v53
  %v108 = vpop.permute.xlu0 %107
  %111 = vset.pattern.permute.xlu0 0
  %112 = vperm.xlu0 %111, %v54
  %v113 = vpop.permute.xlu0 %112
  %116 = vset.pattern.permute.xlu0 0
  %117 = vperm.xlu0 %116, %v55
  %v118 = vpop.permute.xlu0 %117
  %121 = vset.pattern.permute.xlu0 0
  %122 = vperm.xlu0 %121, %v56
  %v123 = vpop.permute.xlu0 %122
  %126 = vset.pattern.permute.xlu0 0
  %127 = vperm.xlu0 %126, %v57
  %v128 = vpop.permute.xlu0 %127
  %131 = vset.pattern.permute.xlu0 0
  %132 = vperm.xlu0 %131, %v58
  %v133 = vpop.permute.xlu0 %132
  %136 = vset.pattern.permute.xlu0 0
  %137 = vperm.xlu0 %136, %v59
  %v138 = vpop.permute.xlu0 %137
  %vm140 = vcmask 64512
  %v142 = vsel %vm140, %v28, 0
  %v145 = vsel %vm140, %v29, 0
  %v148 = vsel %vm140, %v30, 0
  %v151 = vsel %vm140, %v31, 0
  %v154 = vsel %vm140, %v32, 0
  %v157 = vsel %vm140, %v33, 0
  %v160 = vsel %vm140, %v34, 0
  %v163 = vsel %vm140, %v35, 0
  %v166 = vsel %vm140, %v36, 0
  %v169 = vsel %vm140, %v37, 0
  %v172 = vsel %vm140, %v38, 0
  %v175 = vsel %vm140, %v39, 0
  %v178 = vsel %vm140, %v40, 0
  %v181 = vsel %vm140, %v41, 0
  %v184 = vsel %vm140, %v42, 0
  %v187 = vsel %vm140, %v43, 0
  %189 = vmatprep.subr.mxu0 %v27
  %190 = vmatpush1.msra.mxu0 %v26
  %191 = vmatprep.subr.mxu0 0.0
  %192 = vmatpush1.msra.mxu0 0.0
  %193 = vmatprep.subr.mxu0 0.0
  %194 = vmatpush1.msra.mxu0 0.0
  %195 = vmatprep.subr.mxu0 0.0
  %196 = vmatpush1.msra.mxu0 0.0
  %197 = vmatprep.subr.mxu0 0.0
  %198 = vmatpush1.msra.mxu0 0.0
  %199 = vmatprep.subr.mxu0 0.0
  %200 = vmatpush1.msra.mxu0 0.0
  %201 = vmatprep.subr.mxu0 0.0
  %202 = vmatpush1.msra.mxu0 0.0
  %203 = vmatprep.subr.mxu0 0.0
  %204 = vmatpush1.msra.mxu0 0.0
  %205 = vmatprep.subr.mxu0 0.0
  %206 = vmatpush1.msra.mxu0 0.0
  %207 = vmatprep.subr.mxu0 0.0
  %208 = vmatpush1.msra.mxu0 0.0
  %209 = vmatprep.subr.mxu0 0.0
  %210 = vmatpush1.msra.mxu0 0.0
  %211 = vmatprep.subr.mxu0 0.0
  %212 = vmatpush1.msra.mxu0 0.0
  %213 = vmatprep.subr.mxu0 0.0
  %214 = vmatpush1.msra.mxu0 0.0
  %215 = vmatprep.subr.mxu0 0.0
  %216 = vmatpush1.msra.mxu0 0.0
  %217 = vmatprep.subr.mxu0 0.0
  %218 = vmatpush1.msra.mxu0 0.0
  %219 = vmatprep.subr.mxu0 0.0
  %220 = vmatpush1.msra.mxu0 0.0
  %221 = vmatprep.subr.mxu0 0.0
  %222 = vmatpush1.msra.mxu0 0.0
  %223 = vmatprep.subr.mxu0 0.0
  %224 = vmatpush1.msra.mxu0 0.0
  %225 = vmatprep.subr.mxu0 0.0
  %226 = vmatpush1.msra.mxu0 0.0
  %227 = vmatprep.subr.mxu0 0.0
  %228 = vmatpush1.msra.mxu0 0.0
  %229 = vmatprep.subr.mxu0 0.0
  %230 = vmatpush1.msra.mxu0 0.0
  %231 = vmatprep.subr.mxu0 0.0
  %232 = vmatpush1.msra.mxu0 0.0
  %233 = vmatprep.subr.mxu0 0.0
  %234 = vmatpush1.msra.mxu0 0.0
  %235 = vmatprep.subr.mxu0 0.0
  %236 = vmatpush1.msra.mxu0 0.0
  %237 = vmatprep.subr.mxu0 0.0
  %238 = vmatpush1.msra.mxu0 0.0
  %239 = vmatprep.subr.mxu0 0.0
  %240 = vmatpush1.msra.mxu0 0.0
  %241 = vmatprep.subr.mxu0 0.0
  %242 = vmatpush1.msra.mxu0 0.0
  %243 = vmatprep.subr.mxu0 0.0
  %244 = vmatpush1.msra.mxu0 0.0
  %245 = vmatprep.subr.mxu0 0.0
  %246 = vmatpush1.msra.mxu0 0.0
  %247 = vmatprep.subr.mxu0 0.0
  %248 = vmatpush1.msra.mxu0 0.0
  %249 = vmatprep.subr.mxu0 0.0
  %250 = vmatpush1.msra.mxu0 0.0
  %251 = vmatprep.subr.mxu0 0.0
  %252 = vmatpush1.msra.mxu0 0.0
  %253 = vmatprep.mubr.f32.mxu0 0.0
  %254 = vmatmul.mubr.f32.gmra.mrb[0].mxu0 %v142
  %v255 = vpop.f32.mrb[0].mxu0
  %v256 = vadd.f32 %v63, %v255
  %v257 = vpop.f32.mrb[0].mxu0
  %v258 = vadd.f32 %v63, %v257
  %259 = vmatprep.mubr.f32.mxu0 0.0
  %260 = vmatmul.mubr.f32.gmra.mrb[0].mxu0 %v145
  %v261 = vpop.f32.mrb[0].mxu0
  %v262 = vadd.f32 %v68, %v261
  %v263 = vpop.f32.mrb[0].mxu0
  %v264 = vadd.f32 %v68, %v263
  %265 = vmatprep.mubr.f32.mxu0 0.0
  %266 = vmatmul.mubr.f32.gmra.mrb[0].mxu0 %v148
  %v267 = vpop.f32.mrb[0].mxu0
  %v268 = vadd.f32 %v73, %v267
  %v269 = vpop.f32.mrb[0].mxu0
  %v270 = vadd.f32 %v73, %v269
  %271 = vmatprep.mubr.f32.mxu0 0.0
  %272 = vmatmul.mubr.f32.gmra.mrb[0].mxu0 %v151
  %v273 = vpop.f32.mrb[0].mxu0
  %v274 = vadd.f32 %v78, %v273
  %v275 = vpop.f32.mrb[0].mxu0
  %v276 = vadd.f32 %v78, %v275
  %277 = vmatprep.mubr.f32.mxu0 0.0
  %278 = vmatmul.mubr.f32.gmra.mrb[0].mxu0 %v154
  %v279 = vpop.f32.mrb[0].mxu0
  %v280 = vadd.f32 %v83, %v279
  %v281 = vpop.f32.mrb[0].mxu0
  %v282 = vadd.f32 %v83, %v281
  %283 = vmatprep.mubr.f32.mxu0 0.0
  %284 = vmatmul.mubr.f32.gmra.mrb[0].mxu0 %v157
  %v285 = vpop.f32.mrb[0].mxu0
  %v286 = vadd.f32 %v88, %v285
  %v287 = vpop.f32.mrb[0].mxu0
  %v288 = vadd.f32 %v88, %v287
  %289 = vmatprep.mubr.f32.mxu0 0.0
  %290 = vmatmul.mubr.f32.gmra.mrb[0].mxu0 %v160
  %v291 = vpop.f32.mrb[0].mxu0
  %v292 = vadd.f32 %v93, %v291
  %v293 = vpop.f32.mrb[0].mxu0
  %v294 = vadd.f32 %v93, %v293
  %295 = vmatprep.mubr.f32.mxu0 0.0
  %296 = vmatmul.mubr.f32.gmra.mrb[0].mxu0 %v163
  %v297 = vpop.f32.mrb[0].mxu0
  %v298 = vadd.f32 %v98, %v297
  %v299 = vpop.f32.mrb[0].mxu0
  %v300 = vadd.f32 %v98, %v299
  %301 = vmatprep.mubr.f32.mxu0 0.0
  %302 = vmatmul.mubr.f32.gmra.mrb[0].mxu0 %v166
  %v303 = vpop.f32.mrb[0].mxu0
  %v304 = vadd.f32 %v103, %v303
  %v305 = vpop.f32.mrb[0].mxu0
  %v306 = vadd.f32 %v103, %v305
  %307 = vmatprep.mubr.f32.mxu0 0.0
  %308 = vmatmul.mubr.f32.gmra.mrb[0].mxu0 %v169
  %v309 = vpop.f32.mrb[0].mxu0
  %v310 = vadd.f32 %v108, %v309
  %v311 = vpop.f32.mrb[0].mxu0
  %v312 = vadd.f32 %v108, %v311
  %313 = vmatprep.mubr.f32.mxu0 0.0
  %314 = vmatmul.mubr.f32.gmra.mrb[0].mxu0 %v172
  %v315 = vpop.f32.mrb[0].mxu0
  %v316 = vadd.f32 %v113, %v315
  %v317 = vpop.f32.mrb[0].mxu0
  %v318 = vadd.f32 %v113, %v317
  %319 = vmatprep.mubr.f32.mxu0 0.0
  %320 = vmatmul.mubr.f32.gmra.mrb[0].mxu0 %v175
  %v321 = vpop.f32.mrb[0].mxu0
  %v322 = vadd.f32 %v118, %v321
  %v323 = vpop.f32.mrb[0].mxu0
  %v324 = vadd.f32 %v118, %v323
  %325 = vmatprep.mubr.f32.mxu0 0.0
  %326 = vmatmul.mubr.f32.gmra.mrb[0].mxu0 %v178
  %v327 = vpop.f32.mrb[0].mxu0
  %v328 = vadd.f32 %v123, %v327
  %v329 = vpop.f32.mrb[0].mxu0
  %v330 = vadd.f32 %v123, %v329
  %331 = vmatprep.mubr.f32.mxu0 0.0
  %332 = vmatmul.mubr.f32.gmra.mrb[0].mxu0 %v181
  %v333 = vpop.f32.mrb[0].mxu0
  %v334 = vadd.f32 %v128, %v333
  %v335 = vpop.f32.mrb[0].mxu0
  %v336 = vadd.f32 %v128, %v335
  %337 = vmatprep.mubr.f32.mxu0 0.0
  %338 = vmatmul.mubr.f32.gmra.mrb[0].mxu0 %v184
  %v339 = vpop.f32.mrb[0].mxu0
  %v340 = vadd.f32 %v133, %v339
  %v341 = vpop.f32.mrb[0].mxu0
  %v342 = vadd.f32 %v133, %v341
  %343 = vmatprep.mubr.f32.mxu0 0.0
  %344 = vmatmul.mubr.f32.gmra.mrb[0].mxu0 %v187
  %v345 = vpop.f32.mrb[0].mxu0
  %v346 = vadd.f32 %v138, %v345
  %v347 = vpop.f32.mrb[0].mxu0
  %v348 = vadd.f32 %v138, %v347
  %349 = vdwg.mxu0
  %v350 = vtanh.pop %v256
  %v351 = vtanh.pop %v258
  %v352 = vtanh.pop %v262
  %v353 = vtanh.pop %v264
  %v354 = vtanh.pop %v268
  %v355 = vtanh.pop %v270
  %v356 = vtanh.pop %v274
  %v357 = vtanh.pop %v276
  %v358 = vtanh.pop %v280
  %v359 = vtanh.pop %v282
  %v360 = vtanh.pop %v286
  %v361 = vtanh.pop %v288
  %v362 = vtanh.pop %v292
  %v363 = vtanh.pop %v294
  %v364 = vtanh.pop %v298
  %v365 = vtanh.pop %v300
  %v366 = vtanh.pop %v304
  %v367 = vtanh.pop %v306
  %v368 = vtanh.pop %v310
  %v369 = vtanh.pop %v312
  %v370 = vtanh.pop %v316
  %v371 = vtanh.pop %v318
  %v372 = vtanh.pop %v322
  %v373 = vtanh.pop %v324
  %v374 = vtanh.pop %v328
  %v375 = vtanh.pop %v330
  %v376 = vtanh.pop %v334
  %v377 = vtanh.pop %v336
  %v378 = vtanh.pop %v340
  %v379 = vtanh.pop %v342
  %v380 = vtanh.pop %v346
  %v381 = vtanh.pop %v348
  %v382 = vld [vmem:[%s3] sm:$0xff]
  %v383 = vld [vmem:[%s3 + $0x8] sm:$0xff]
  %v384 = vld [vmem:[%s3 + $0x10] sm:$0xff]
  %v385 = vld [vmem:[%s3 + $0x18] sm:$0xff]
  %v386 = vld [vmem:[%s3 + $0x20] sm:$0xff]
  %v387 = vld [vmem:[%s3 + $0x28] sm:$0xff]
  %v388 = vld [vmem:[%s3 + $0x30] sm:$0xff]
  %v389 = vld [vmem:[%s3 + $0x38] sm:$0xff]
  %v390 = vld [vmem:[%s3 + $0x40] sm:$0xff]
  %v391 = vld [vmem:[%s3 + $0x48] sm:$0xff]
  %v392 = vld [vmem:[%s3 + $0x50] sm:$0xff]
  %v393 = vld [vmem:[%s3 + $0x58] sm:$0xff]
  %v394 = vld [vmem:[%s3 + $0x60] sm:$0xff]
  %v395 = vld [vmem:[%s3 + $0x68] sm:$0xff]
  %v396 = vld [vmem:[%s3 + $0x70] sm:$0xff]
  %v397 = vld [vmem:[%s3 + $0x78] sm:$0xff]
  %v398 = vld [vmem:[%s4] sm:$0xff]
  %v399 = vld [vmem:[%s4 + $0x8] sm:$0xff]
  %v400 = vld [vmem:[%s4 + $0x10] sm:$0xff]
  %v401 = vld [vmem:[%s4 + $0x18] sm:$0xff]
  %v402 = vld [vmem:[%s4 + $0x20] sm:$0xff]
  %v403 = vld [vmem:[%s4 + $0x28] sm:$0xff]
  %v404 = vld [vmem:[%s4 + $0x30] sm:$0xff]
  %v405 = vld [vmem:[%s4 + $0x38] sm:$0xff]
  %v406 = vld [vmem:[%s4 + $0x40] sm:$0xff]
  %v407 = vld [vmem:[%s4 + $0x48] sm:$0xff]
  %v408 = vld [vmem:[%s4 + $0x50] sm:$0xff]
  %v409 = vld [vmem:[%s4 + $0x58] sm:$0xff]
  %v410 = vld [vmem:[%s4 + $0x60] sm:$0xff]
  %v411 = vld [vmem:[%s4 + $0x68] sm:$0xff]
  %v412 = vld [vmem:[%s4 + $0x70] sm:$0xff]
  %v413 = vld [vmem:[%s4 + $0x78] sm:$0xff]
  %415 = vset.pattern.permute.xlu0 0
  %416 = vperm.xlu0 %415, %v398
  %v417 = vpop.permute.xlu0 %416
  %420 = vset.pattern.permute.xlu0 0
  %421 = vperm.xlu0 %420, %v399
  %v422 = vpop.permute.xlu0 %421
  %425 = vset.pattern.permute.xlu0 0
  %426 = vperm.xlu0 %425, %v400
  %v427 = vpop.permute.xlu0 %426
  %430 = vset.pattern.permute.xlu0 0
  %431 = vperm.xlu0 %430, %v401
  %v432 = vpop.permute.xlu0 %431
  %435 = vset.pattern.permute.xlu0 0
  %436 = vperm.xlu0 %435, %v402
  %v437 = vpop.permute.xlu0 %436
  %440 = vset.pattern.permute.xlu0 0
  %441 = vperm.xlu0 %440, %v403
  %v442 = vpop.permute.xlu0 %441
  %445 = vset.pattern.permute.xlu0 0
  %446 = vperm.xlu0 %445, %v404
  %v447 = vpop.permute.xlu0 %446
  %450 = vset.pattern.permute.xlu0 0
  %451 = vperm.xlu0 %450, %v405
  %v452 = vpop.permute.xlu0 %451
  %455 = vset.pattern.permute.xlu0 0
  %456 = vperm.xlu0 %455, %v406
  %v457 = vpop.permute.xlu0 %456
  %460 = vset.pattern.permute.xlu0 0
  %461 = vperm.xlu0 %460, %v407
  %v462 = vpop.permute.xlu0 %461
  %465 = vset.pattern.permute.xlu0 0
  %466 = vperm.xlu0 %465, %v408
  %v467 = vpop.permute.xlu0 %466
  %470 = vset.pattern.permute.xlu0 0
  %471 = vperm.xlu0 %470, %v409
  %v472 = vpop.permute.xlu0 %471
  %475 = vset.pattern.permute.xlu0 0
  %476 = vperm.xlu0 %475, %v410
  %v477 = vpop.permute.xlu0 %476
  %480 = vset.pattern.permute.xlu0 0
  %481 = vperm.xlu0 %480, %v411
  %v482 = vpop.permute.xlu0 %481
  %485 = vset.pattern.permute.xlu0 0
  %486 = vperm.xlu0 %485, %v412
  %v487 = vpop.permute.xlu0 %486
  %490 = vset.pattern.permute.xlu0 0
  %491 = vperm.xlu0 %490, %v413
  %v492 = vpop.permute.xlu0 %491
  %494 = vmatprep.subr.mxu0 %v351
  %495 = vmatpush1.msra.mxu0 %v350
  %496 = vmatprep.subr.mxu0 %v353
  %497 = vmatpush1.msra.mxu0 %v352
  %498 = vmatprep.subr.mxu0 %v355
  %499 = vmatpush1.msra.mxu0 %v354
  %500 = vmatprep.subr.mxu0 %v357
  %501 = vmatpush1.msra.mxu0 %v356
  %502 = vmatprep.subr.mxu0 %v359
  %503 = vmatpush1.msra.mxu0 %v358
  %504 = vmatprep.subr.mxu0 %v361
  %505 = vmatpush1.msra.mxu0 %v360
  %506 = vmatprep.subr.mxu0 %v363
  %507 = vmatpush1.msra.mxu0 %v362
  %508 = vmatprep.subr.mxu0 %v365
  %509 = vmatpush1.msra.mxu0 %v364
  %510 = vmatprep.subr.mxu0 %v367
  %511 = vmatpush1.msra.mxu0 %v366
  %512 = vmatprep.subr.mxu0 %v369
  %513 = vmatpush1.msra.mxu0 %v368
  %514 = vmatprep.subr.mxu0 %v371
  %515 = vmatpush1.msra.mxu0 %v370
  %516 = vmatprep.subr.mxu0 %v373
  %517 = vmatpush1.msra.mxu0 %v372
  %518 = vmatprep.subr.mxu0 %v375
  %519 = vmatpush1.msra.mxu0 %v374
  %520 = vmatprep.subr.mxu0 %v377
  %521 = vmatpush1.msra.mxu0 %v376
  %522 = vmatprep.subr.mxu0 %v379
  %523 = vmatpush1.msra.mxu0 %v378
  %524 = vmatprep.subr.mxu0 %v381
  %525 = vmatpush1.msra.mxu0 %v380
  %526 = vmatprep.subr.mxu0 0.0
  %527 = vmatpush1.msra.mxu0 0.0
  %528 = vmatprep.subr.mxu0 0.0
  %529 = vmatpush1.msra.mxu0 0.0
  %530 = vmatprep.subr.mxu0 0.0
  %531 = vmatpush1.msra.mxu0 0.0
  %532 = vmatprep.subr.mxu0 0.0
  %533 = vmatpush1.msra.mxu0 0.0
  %534 = vmatprep.subr.mxu0 0.0
  %535 = vmatpush1.msra.mxu0 0.0
  %536 = vmatprep.subr.mxu0 0.0
  %537 = vmatpush1.msra.mxu0 0.0
  %538 = vmatprep.subr.mxu0 0.0
  %539 = vmatpush1.msra.mxu0 0.0
  %540 = vmatprep.subr.mxu0 0.0
  %541 = vmatpush1.msra.mxu0 0.0
  %542 = vmatprep.subr.mxu0 0.0
  %543 = vmatpush1.msra.mxu0 0.0
  %544 = vmatprep.subr.mxu0 0.0
  %545 = vmatpush1.msra.mxu0 0.0
  %546 = vmatprep.subr.mxu0 0.0
  %547 = vmatpush1.msra.mxu0 0.0
  %548 = vmatprep.subr.mxu0 0.0
  %549 = vmatpush1.msra.mxu0 0.0
  %550 = vmatprep.subr.mxu0 0.0
  %551 = vmatpush1.msra.mxu0 0.0
  %552 = vmatprep.subr.mxu0 0.0
  %553 = vmatpush1.msra.mxu0 0.0
  %554 = vmatprep.subr.mxu0 0.0
  %555 = vmatpush1.msra.mxu0 0.0
  %556 = vmatprep.subr.mxu0 0.0
  %557 = vmatpush1.msra.mxu0 0.0
  %558 = vmatprep.mubr.f32.mxu0 0.0
  %559 = vmatmul.mubr.f32.gmra.mrb[0].mxu0 %v382
  %v560 = vpop.f32.mrb[0].mxu0
  %v561 = vadd.f32 %v417, %v560
  %v562 = vpop.f32.mrb[0].mxu0
  %v563 = vadd.f32 %v417, %v562
  %564 = vmatprep.mubr.f32.mxu0 0.0
  %565 = vmatmul.mubr.f32.gmra.mrb[0].mxu0 %v383
  %v566 = vpop.f32.mrb[0].mxu0
  %v567 = vadd.f32 %v422, %v566
  %v568 = vpop.f32.mrb[0].mxu0
  %v569 = vadd.f32 %v422, %v568
  %570 = vmatprep.mubr.f32.mxu0 0.0
  %571 = vmatmul.mubr.f32.gmra.mrb[0].mxu0 %v384
  %v572 = vpop.f32.mrb[0].mxu0
  %v573 = vadd.f32 %v427, %v572
  %v574 = vpop.f32.mrb[0].mxu0
  %v575 = vadd.f32 %v427, %v574
  %576 = vmatprep.mubr.f32.mxu0 0.0
  %577 = vmatmul.mubr.f32.gmra.mrb[0].mxu0 %v385
  %v578 = vpop.f32.mrb[0].mxu0
  %v579 = vadd.f32 %v432, %v578
  %v580 = vpop.f32.mrb[0].mxu0
  %v581 = vadd.f32 %v432, %v580
  %582 = vmatprep.mubr.f32.mxu0 0.0
  %583 = vmatmul.mubr.f32.gmra.mrb[0].mxu0 %v386
  %v584 = vpop.f32.mrb[0].mxu0
  %v585 = vadd.f32 %v437, %v584
  %v586 = vpop.f32.mrb[0].mxu0
  %v587 = vadd.f32 %v437, %v586
  %588 = vmatprep.mubr.f32.mxu0 0.0
  %589 = vmatmul.mubr.f32.gmra.mrb[0].mxu0 %v387
  %v590 = vpop.f32.mrb[0].mxu0
  %v591 = vadd.f32 %v442, %v590
  %v592 = vpop.f32.mrb[0].mxu0
  %v593 = vadd.f32 %v442, %v592
  %594 = vmatprep.mubr.f32.mxu0 0.0
  %595 = vmatmul.mubr.f32.gmra.mrb[0].mxu0 %v388
  %v596 = vpop.f32.mrb[0].mxu0
  %v597 = vadd.f32 %v447, %v596
  %v598 = vpop.f32.mrb[0].mxu0
  %v599 = vadd.f32 %v447, %v598
  %600 = vmatprep.mubr.f32.mxu0 0.0
  %601 = vmatmul.mubr.f32.gmra.mrb[0].mxu0 %v389
  %v602 = vpop.f32.mrb[0].mxu0
  %v603 = vadd.f32 %v452, %v602
  %v604 = vpop.f32.mrb[0].mxu0
  %v605 = vadd.f32 %v452, %v604
  %606 = vmatprep.mubr.f32.mxu0 0.0
  %607 = vmatmul.mubr.f32.gmra.mrb[0].mxu0 %v390
  %v608 = vpop.f32.mrb[0].mxu0
  %v609 = vadd.f32 %v457, %v608
  %v610 = vpop.f32.mrb[0].mxu0
  %v611 = vadd.f32 %v457, %v610
  %612 = vmatprep.mubr.f32.mxu0 0.0
  %613 = vmatmul.mubr.f32.gmra.mrb[0].mxu0 %v391
  %v614 = vpop.f32.mrb[0].mxu0
  %v615 = vadd.f32 %v462, %v614
  %v616 = vpop.f32.mrb[0].mxu0
  %v617 = vadd.f32 %v462, %v616
  %618 = vmatprep.mubr.f32.mxu0 0.0
  %619 = vmatmul.mubr.f32.gmra.mrb[0].mxu0 %v392
  %v620 = vpop.f32.mrb[0].mxu0
  %v621 = vadd.f32 %v467, %v620
  %v622 = vpop.f32.mrb[0].mxu0
  %v623 = vadd.f32 %v467, %v622
  %624 = vmatprep.mubr.f32.mxu0 0.0
  %625 = vmatmul.mubr.f32.gmra.mrb[0].mxu0 %v393
  %v626 = vpop.f32.mrb[0].mxu0
  %v627 = vadd.f32 %v472, %v626
  %v628 = vpop.f32.mrb[0].mxu0
  %v629 = vadd.f32 %v472, %v628
  %630 = vmatprep.mubr.f32.mxu0 0.0
  %631 = vmatmul.mubr.f32.gmra.mrb[0].mxu0 %v394
  %v632 = vpop.f32.mrb[0].mxu0
  %v633 = vadd.f32 %v477, %v632
  %v634 = vpop.f32.mrb[0].mxu0
  %v635 = vadd.f32 %v477, %v634
  %636 = vmatprep.mubr.f32.mxu0 0.0
  %637 = vmatmul.mubr.f32.gmra.mrb[0].mxu0 %v395
  %v638 = vpop.f32.mrb[0].mxu0
  %v639 = vadd.f32 %v482, %v638
  %v640 = vpop.f32.mrb[0].mxu0
  %v641 = vadd.f32 %v482, %v640
  %642 = vmatprep.mubr.f32.mxu0 0.0
  %643 = vmatmul.mubr.f32.gmra.mrb[0].mxu0 %v396
  %v644 = vpop.f32.mrb[0].mxu0
  %v645 = vadd.f32 %v487, %v644
  %v646 = vpop.f32.mrb[0].mxu0
  %v647 = vadd.f32 %v487, %v646
  %648 = vmatprep.mubr.f32.mxu0 0.0
  %649 = vmatmul.mubr.f32.gmra.mrb[0].mxu0 %v397
  %v650 = vpop.f32.mrb[0].mxu0
  %v651 = vadd.f32 %v492, %v650
  %v652 = vpop.f32.mrb[0].mxu0
  %v653 = vadd.f32 %v492, %v652
  %654 = vdwg.mxu0
  %v655 = vtanh.pop %v561
  %v656 = vtanh.pop %v563
  %v657 = vtanh.pop %v567
  %v658 = vtanh.pop %v569
  %v659 = vtanh.pop %v573
  %v660 = vtanh.pop %v575
  %v661 = vtanh.pop %v579
  %v662 = vtanh.pop %v581
  %v663 = vtanh.pop %v585
  %v664 = vtanh.pop %v587
  %v665 = vtanh.pop %v591
  %v666 = vtanh.pop %v593
  %v667 = vtanh.pop %v597
  %v668 = vtanh.pop %v599
  %v669 = vtanh.pop %v603
  %v670 = vtanh.pop %v605
  %v671 = vtanh.pop %v609
  %v672 = vtanh.pop %v611
  %v673 = vtanh.pop %v615
  %v674 = vtanh.pop %v617
  %v675 = vtanh.pop %v621
  %v676 = vtanh.pop %v623
  %v677 = vtanh.pop %v627
  %v678 = vtanh.pop %v629
  %v679 = vtanh.pop %v633
  %v680 = vtanh.pop %v635
  %v681 = vtanh.pop %v639
  %v682 = vtanh.pop %v641
  %v683 = vtanh.pop %v645
  %v684 = vtanh.pop %v647
  %v685 = vtanh.pop %v651
  %v686 = vtanh.pop %v653
  %v687 = vld [vmem:[%s5] sm:$0xff]
  %v688 = vld [vmem:[%s6] sm:$0xff]
  %690 = vset.pattern.permute.xlu0 0
  %691 = vperm.xlu0 %690, %v688
  %v692 = vpop.permute.xlu0 %691
  %694 = vmatprep.subr.mxu0 %v656
  %695 = vmatpush1.msra.mxu0 %v655
  %696 = vmatprep.subr.mxu0 %v658
  %697 = vmatpush1.msra.mxu0 %v657
  %698 = vmatprep.subr.mxu0 %v660
  %699 = vmatpush1.msra.mxu0 %v659
  %700 = vmatprep.subr.mxu0 %v662
  %701 = vmatpush1.msra.mxu0 %v661
  %702 = vmatprep.subr.mxu0 %v664
  %703 = vmatpush1.msra.mxu0 %v663
  %704 = vmatprep.subr.mxu0 %v666
  %705 = vmatpush1.msra.mxu0 %v665
  %706 = vmatprep.subr.mxu0 %v668
  %707 = vmatpush1.msra.mxu0 %v667
  %708 = vmatprep.subr.mxu0 %v670
  %709 = vmatpush1.msra.mxu0 %v669
  %710 = vmatprep.subr.mxu0 %v672
  %711 = vmatpush1.msra.mxu0 %v671
  %712 = vmatprep.subr.mxu0 %v674
  %713 = vmatpush1.msra.mxu0 %v673
  %714 = vmatprep.subr.mxu0 %v676
  %715 = vmatpush1.msra.mxu0 %v675
  %716 = vmatprep.subr.mxu0 %v678
  %717 = vmatpush1.msra.mxu0 %v677
  %718 = vmatprep.subr.mxu0 %v680
  %719 = vmatpush1.msra.mxu0 %v679
  %720 = vmatprep.subr.mxu0 %v682
  %721 = vmatpush1.msra.mxu0 %v681
  %722 = vmatprep.subr.mxu0 %v684
  %723 = vmatpush1.msra.mxu0 %v683
  %724 = vmatprep.subr.mxu0 %v686
  %725 = vmatpush1.msra.mxu0 %v685
  %726 = vmatprep.subr.mxu0 0.0
  %727 = vmatpush1.msra.mxu0 0.0
  %728 = vmatprep.subr.mxu0 0.0
  %729 = vmatpush1.msra.mxu0 0.0
  %730 = vmatprep.subr.mxu0 0.0
  %731 = vmatpush1.msra.mxu0 0.0
  %732 = vmatprep.subr.mxu0 0.0
  %733 = vmatpush1.msra.mxu0 0.0
  %734 = vmatprep.subr.mxu0 0.0
  %735 = vmatpush1.msra.mxu0 0.0
  %736 = vmatprep.subr.mxu0 0.0
  %737 = vmatpush1.msra.mxu0 0.0
  %738 = vmatprep.subr.mxu0 0.0
  %739 = vmatpush1.msra.mxu0 0.0
  %740 = vmatprep.subr.mxu0 0.0
  %741 = vmatpush1.msra.mxu0 0.0
  %742 = vmatprep.subr.mxu0 0.0
  %743 = vmatpush1.msra.mxu0 0.0
  %744 = vmatprep.subr.mxu0 0.0
  %745 = vmatpush1.msra.mxu0 0.0
  %746 = vmatprep.subr.mxu0 0.0
  %747 = vmatpush1.msra.mxu0 0.0
  %748 = vmatprep.subr.mxu0 0.0
  %749 = vmatpush1.msra.mxu0 0.0
  %750 = vmatprep.subr.mxu0 0.0
  %751 = vmatpush1.msra.mxu0 0.0
  %752 = vmatprep.subr.mxu0 0.0
  %753 = vmatpush1.msra.mxu0 0.0
  %754 = vmatprep.subr.mxu0 0.0
  %755 = vmatpush1.msra.mxu0 0.0
  %756 = vmatprep.subr.mxu0 0.0
  %757 = vmatpush1.msra.mxu0 0.0
  %758 = vmatprep.mubr.f32.mxu0 0.0
  %759 = vmatmul.mubr.f32.gmra.mrb[0].mxu0 %v687
  %v760 = vpop.f32.mrb[0].mxu0
  %v761 = vadd.f32 %v692, %v760
  %v762 = vpop.f32.mrb[0].mxu0
  %v763 = vadd.f32 %v692, %v762
  %764 = vdwg.mxu0
  %765 = vst [vmem:[%s7] sm:$0xff] %v761
  %766 = vst [vmem:[%s7 + $0x8] sm:$0xff] %v763
  // Predicated region
  $region30: #{_forward_impl.1} parent=0 // pred_check
    _
  $region31: #{_forward_impl.1} parent=0 // pred_check_branch
    %768 = sbr.rel (0) target = $region33
  $region32: #{_forward_impl.1} parent=0 // pred_region
    _
  $region33: #{_forward_impl.1} parent=0 // pred_fallthru
    _
  // Predicated region
  $region34: #{_forward_impl.1} parent=0 // pred_check
    _
  $region35: #{_forward_impl.1} parent=0 // pred_check_branch
    %770 = sbr.rel (0) target = $region37
  $region36: #{_forward_impl.1} parent=0 // pred_region
    _
  $region37: #{_forward_impl.1} parent=0 // pred_fallthru
    _

</llo_original>
